<compile_context>
chip_gen: v6e
topology: v6e:2x2x1
jax: 0.10.0
libtpu: 0.0.40
codegen_flags: <defaults>
</compile_context>

<pallas_src>
import functools

import jax
import jax.numpy as jnp
from jax import lax
from jax.experimental import pallas as pl
from jax.experimental.pallas import tpu as pltpu


def _angleproto_kernel(x_ref, out_ref, cos_ref, *, margin, matmul_dtype):
    # x_ref: (N, M, D) in VMEM (native dtype).
    # out_ref: (1, 3) f32 in SMEM holding [nloss, prec1, prec2].
    # cos_ref: (N, N) f32 VMEM scratch holding the cosine-similarity matrix.
    N, M, D = x_ref.shape

    # positive = x[:, 0, :]; anchor = mean(x[:, 1:, :], axis=1).  Sublane slices of the
    # native layout (lane-aligned for any D); the only f32 cast lives here, in VMEM.
    pos = x_ref[:, 0, :].astype(jnp.float32)                         # (N, D)
    anc = x_ref[:, 1, :].astype(jnp.float32)
    for j in range(2, M):                                            # M (utts/speaker) small
        anc = anc + x_ref[:, j, :].astype(jnp.float32)
    anc = anc * (1.0 / (M - 1))                                      # (N, D)

    # Normalize operands so ONE MXU matmul yields the cosine-similarity matrix directly.
    # rsqrt(max(||v||^2, 1e-16)) == 1 / max(||v||, 1e-8): equivalent to torch's
    # max(||p||*||a||, 1e-8) clamp except for degenerate ~zero embeddings.
    pos_sq = jnp.sum(pos * pos, axis=-1, keepdims=True)              # (N, 1)
    anc_sq = jnp.sum(anc * anc, axis=-1, keepdims=True)              # (N, 1)
    pos_n = pos * lax.rsqrt(jnp.maximum(pos_sq, 1e-16))
    anc_n = anc * lax.rsqrt(jnp.maximum(anc_sq, 1e-16))

    # Cosine matrix: bf16 operands at large N (native MXU rate on v6e/v7x), f32 accumulate.
    cos = lax.dot_general(pos_n.astype(matmul_dtype), anc_n.astype(matmul_dtype),
                          (((1,), (1,)), ((), ())),
                          preferred_element_type=jnp.float32)        # (N, N)
    cos_ref[...] = cos          # park in VMEM: the compare loop takes cheap dynamic row loads

    # Positive similarities (diagonal) as an f32 row-wise dot (off the MXU result path).
    s_p = jnp.sum(pos_n * anc_n, axis=-1, keepdims=True)             # (N, 1)
    spm = s_p - margin                                               # hoisted out of the loop
    neg_m = jnp.float32(-margin)

    rows = lax.broadcasted_iota(jnp.int32, (N, N), 0)
    cols = lax.broadcasted_iota(jnp.int32, (N, N), 1)
    offdiag = rows != cols                                           # boolean, never cast to f32

    # prec2: top-1 accuracy of [s_p[i], s_n...] vs label 0  <=>  s_p[i] >= max off-diag sim.
    sn_max = jnp.max(jnp.where(offdiag, cos, -jnp.inf))
    prec2_hits = jnp.sum(jnp.where(s_p >= sn_max, 1.0, 0.0))

    # --- O(N^3) comparison: every s_p[i] vs every entry of cos, UNMASKED, row by row. ------
    # (N,1) lane-reduced carries; the diagonal (j == k) terms are removed exactly afterwards.
    def body(k, carry):
        acc_loss, acc_hit = carry
        row = cos_ref[pl.ds(k, 1), :]                                # (1, N) dynamic row load
        diff = spm - row                                             # (N, N) broadcast, VALU
        acc_loss = acc_loss + jnp.sum(jnp.minimum(diff, 0.0), axis=-1, keepdims=True)
        acc_hit = acc_hit + jnp.sum(jnp.where(diff > neg_m, 1.0, 0.0), axis=-1, keepdims=True)
        return acc_loss, acc_hit

    acc0 = (jnp.zeros((N, 1), jnp.float32), jnp.zeros((N, 1), jnp.float32))
    acc_loss, acc_hit = lax.fori_loop(0, N, body, acc0, unroll=min(8, N))
    loss_full = jnp.sum(acc_loss)
    hit_full = jnp.sum(acc_hit)

    # Diagonal correction as ONE (N,N) tile op, using the matmul's own diagonal values so the
    # subtracted terms are bitwise identical to what the loop added (hit count cancels exactly).
    diag_row = jnp.sum(jnp.where(offdiag, 0.0, cos), axis=0, keepdims=True)   # (1, N) = cos[k,k]
    cdiff = spm - diag_row                                                    # (N, N)
    loss_corr = jnp.sum(jnp.minimum(cdiff, 0.0))
    hit_corr = jnp.sum(jnp.where(cdiff > neg_m, 1.0, 0.0))

    loss_sum = loss_full - loss_corr
    hit_sum = hit_full - hit_corr

    total = jnp.float32(N) * jnp.float32(N) * jnp.float32(N - 1)     # b_p * b_n pairs
    out_ref[0, 0] = -loss_sum / total                                # nloss
    out_ref[0, 1] = 100.0 * hit_sum / total                          # prec1
    out_ref[0, 2] = 100.0 * prec2_hits / jnp.float32(N)              # prec2


def _vmem_limit_bytes():
    """Generation-dependent scoped-VMEM limit (64 MiB physical on v7x, 128 MiB on v5e/v6e)."""
    phys = 64 * 1024 * 1024                                          # conservative fallback
    try:
        info = pltpu.get_tpu_info()
        phys = int(getattr(info, "vmem_capacity_bytes", phys)) or phys
    except Exception:
        pass
    return int(min(100 * 1024 * 1024, (phys * 3) // 4))


def angleproto_loss(x, margin=0.4, matmul_dtype=None):
    """x: (N, M, D) = (speakers, utterances, embed_dim), same convention as the PyTorch
    module.  Returns (nloss, prec1, prec2)."""
    N, M, D = x.shape
    assert M >= 2
    if matmul_dtype is None:
        # bf16 MXU operands are native-rate on v6e/v7x and well within the loss tolerance;
        # keep f32 at small N, where the matmul is negligible and prec1 ties are cheaper to avoid.
        matmul_dtype = jnp.bfloat16 if N >= 256 else jnp.float32

    kernel = functools.partial(_angleproto_kernel, margin=float(margin),
                               matmul_dtype=matmul_dtype)
    out = pl.pallas_call(
        kernel,
        out_shape=jax.ShapeDtypeStruct((1, 3), jnp.float32),
        in_specs=[pl.BlockSpec(memory_space=pltpu.MemorySpace.VMEM)],
        out_specs=pl.BlockSpec(memory_space=pltpu.MemorySpace.SMEM),
        scratch_shapes=[pltpu.VMEM((N, N), jnp.float32)],
        compiler_params=pltpu.CompilerParams(vmem_limit_bytes=_vmem_limit_bytes()),
    )(x)
    return out[0, 0], out[0, 1], out[0, 2]


def _reference(x, margin=0.4):
    """Pure-JAX transcription of the PyTorch forward, for validation."""
    N = x.shape[0]
    pos = x[:, 0, :]
    anc = jnp.mean(x[:, 1:, :], axis=1)
    dots = pos @ anc.T
    denom = jnp.maximum(jnp.linalg.norm(pos, axis=1)[:, None] *
                        jnp.linalg.norm(anc, axis=1)[None, :], 1e-8)
    cos = dots / denom
    s_p = jnp.diagonal(cos)
    s_n = cos.reshape(-1)[1:].reshape(N - 1, N + 1)[:, :-1].reshape(-1)
    sp = s_p[:, None]
    sn = s_n[None, :]
    nloss = -jnp.mean(jnp.minimum(sp - sn - margin, 0.0))
    prec1 = 100.0 * jnp.mean((sp > sn).astype(jnp.float32))
    s = jnp.concatenate([sp, jnp.broadcast_to(sn, (N, s_n.shape[0]))], axis=1)
    prec2 = 100.0 * jnp.mean((jnp.argmax(s, axis=1) == 0).astype(jnp.float32))
    return nloss, prec1, prec2


if __name__ == "__main__":
    key = jax.random.PRNGKey(0)
    N, M, D = 8, 3, 32                      # speakers, utterances per speaker, embedding dim
    x = jax.random.normal(key, (N, M, D), dtype=jnp.float32)

    # Module parameters w=10, b=-5 exist in __init__ but are never applied in this forward
    # (torch.clamp(self.w, 1e-6) is out-of-place and its result is discarded), so omitted.

    nloss, prec1, prec2 = angleproto_loss(x, margin=0.4)
    jax.block_until_ready((nloss, prec1, prec2))

    ref_loss, ref_p1, ref_p2 = _reference(x, margin=0.4)
    assert abs(float(nloss) - float(ref_loss)) < 5e-3, (nloss, ref_loss)
    assert abs(float(prec1) - float(ref_p1)) < 5e-2, (prec1, ref_p1)
    assert abs(float(prec2) - float(ref_p2)) < 5e-2, (prec2, ref_p2)

    print("KERNEL_OK")
</pallas_src>

<mosaic_0001>
module attributes {stable_mosaic.version = 11 : i64} {
  func.func @_angleproto_kernel(%arg0: memref<8x3x32xf32, #tpu.memory_space<vmem>>, %arg1: memref<1x3xf32, #tpu.memory_space<smem>>, %arg2: memref<8x8xf32, #tpu.memory_space<vmem>>) attributes {dimension_semantics = [], scalar_prefetch = 0 : i64, scratch_operands = 1 : i64, tpu.core_type = #tpu.core_type<tc>} {
    %c0 = arith.constant 0 : index
    %c0_0 = arith.constant 0 : index
    %c0_1 = arith.constant 0 : index
    %0 = vector.load %arg0[%c0, %c0_0, %c0_1] : memref<8x3x32xf32, #tpu.memory_space<vmem>>, vector<8x1x32xf32>
    %1 = vector.shape_cast %0 : vector<8x1x32xf32> to vector<8x32xf32>
    %c0_2 = arith.constant 0 : index
    %c1 = arith.constant 1 : index
    %c0_3 = arith.constant 0 : index
    %2 = vector.load %arg0[%c0_2, %c1, %c0_3] : memref<8x3x32xf32, #tpu.memory_space<vmem>>, vector<8x1x32xf32>
    %3 = vector.shape_cast %2 : vector<8x1x32xf32> to vector<8x32xf32>
    %c0_4 = arith.constant 0 : index
    %c2 = arith.constant 2 : index
    %c0_5 = arith.constant 0 : index
    %4 = vector.load %arg0[%c0_4, %c2, %c0_5] : memref<8x3x32xf32, #tpu.memory_space<vmem>>, vector<8x1x32xf32>
    %5 = vector.shape_cast %4 : vector<8x1x32xf32> to vector<8x32xf32>
    %6 = arith.addf %3, %5 : vector<8x32xf32>
    %cst = arith.constant 5.000000e-01 : f32
    %7 = vector.broadcast %cst : f32 to vector<8x32xf32>
    %8 = arith.mulf %6, %7 : vector<8x32xf32>
    %9 = arith.mulf %1, %1 : vector<8x32xf32>
    %cst_6 = arith.constant dense<0.000000e+00> : vector<8xf32>
    %10 = vector.multi_reduction <add>, %9, %cst_6 [1] : vector<8x32xf32> to vector<8xf32>
    %11 = vector.shape_cast %10 : vector<8xf32> to vector<8x1xf32>
    %12 = arith.mulf %8, %8 : vector<8x32xf32>
    %cst_7 = arith.constant dense<0.000000e+00> : vector<8xf32>
    %13 = vector.multi_reduction <add>, %12, %cst_7 [1] : vector<8x32xf32> to vector<8xf32>
    %14 = vector.shape_cast %13 : vector<8xf32> to vector<8x1xf32>
    %cst_8 = arith.constant 1.000000e-16 : f32
    %15 = vector.broadcast %cst_8 : f32 to vector<8x1xf32>
    %16 = arith.maximumf %11, %15 : vector<8x1xf32>
    %17 = math.rsqrt %16 : vector<8x1xf32>
    %18 = vector.broadcast %17 : vector<8x1xf32> to vector<8x32xf32>
    %19 = arith.mulf %1, %18 : vector<8x32xf32>
    %cst_9 = arith.constant 1.000000e-16 : f32
    %20 = vector.broadcast %cst_9 : f32 to vector<8x1xf32>
    %21 = arith.maximumf %14, %20 : vector<8x1xf32>
    %22 = math.rsqrt %21 : vector<8x1xf32>
    %23 = vector.broadcast %22 : vector<8x1xf32> to vector<8x32xf32>
    %24 = arith.mulf %8, %23 : vector<8x32xf32>
    %cst_10 = arith.constant dense<0.000000e+00> : vector<8x8xf32>
    %25 = tpu.matmul %19, %24, %cst_10 {dimension_numbers = #tpu.dot_dimension_numbers<[1], [1], [0], [0], [0, 0, 1, 0], [], []>} : vector<8x32xf32>, vector<8x32xf32>, vector<8x8xf32> -> vector<8x8xf32>
    %c0_11 = arith.constant 0 : index
    %c0_12 = arith.constant 0 : index
    %26 = vector.load %arg2[%c0_11, %c0_12] : memref<8x8xf32, #tpu.memory_space<vmem>>, vector<8x8xf32>
    tpu.vector_store %arg2[%c0_11, %c0_12], %25 {strides = array<i32>} : memref<8x8xf32, #tpu.memory_space<vmem>>, vector<8x8xf32>,
    %27 = arith.mulf %19, %24 : vector<8x32xf32>
    %cst_13 = arith.constant dense<0.000000e+00> : vector<8xf32>
    %28 = vector.multi_reduction <add>, %27, %cst_13 [1] : vector<8x32xf32> to vector<8xf32>
    %29 = vector.shape_cast %28 : vector<8xf32> to vector<8x1xf32>
    %cst_14 = arith.constant 4.000000e-01 : f32
    %30 = vector.broadcast %cst_14 : f32 to vector<8x1xf32>
    %31 = arith.subf %29, %30 : vector<8x1xf32>
    %32 = tpu.iota {dimensions = array<i32: 0>} : vector<8x8xi32>
    %33 = tpu.iota {dimensions = array<i32: 1>} : vector<8x8xi32>
    %34 = arith.cmpi ne, %32, %33 : vector<8x8xi32>
    %cst_15 = arith.constant 0xFF800000 : f32
    %35 = vector.broadcast %cst_15 : f32 to vector<8x8xf32>
    %36 = arith.select %34, %25, %35 : vector<8x8xi1>, vector<8x8xf32>
    %37 = vector.shape_cast %36 : vector<8x8xf32> to vector<1x8x8xf32>
    %cst_16 = arith.constant dense<0xFF800000> : vector<1xf32>
    %38 = vector.multi_reduction <maximumf>, %37, %cst_16 [1, 2] : vector<1x8x8xf32> to vector<1xf32>
    %39 = vector.shape_cast %38 : vector<1xf32> to vector<1x1x1xf32>
    %40 = vector.extract %39[0, 0, 0] : f32 from vector<1x1x1xf32>
    %41 = vector.broadcast %40 : f32 to vector<8x1xf32>
    %42 = arith.cmpf oge, %29, %41 : vector<8x1xf32>
    %cst_17 = arith.constant 1.000000e+00 : f32
    %cst_18 = arith.constant 0.000000e+00 : f32
    %43 = vector.broadcast %cst_17 : f32 to vector<8x1xf32>
    %44 = vector.broadcast %cst_18 : f32 to vector<8x1xf32>
    %45 = arith.select %42, %43, %44 : vector<8x1xi1>, vector<8x1xf32>
    %46 = vector.shape_cast %45 : vector<8x1xf32> to vector<1x8x1xf32>
    %cst_19 = arith.constant dense<0.000000e+00> : vector<1xf32>
    %47 = vector.multi_reduction <add>, %46, %cst_19 [1, 2] : vector<1x8x1xf32> to vector<1xf32>
    %48 = vector.shape_cast %47 : vector<1xf32> to vector<1x1x1xf32>
    %49 = vector.extract %48[0, 0, 0] : f32 from vector<1x1x1xf32>
    %cst_20 = arith.constant 0.000000e+00 : f32
    %50 = vector.broadcast %cst_20 : f32 to vector<8x1xf32>
    %cst_21 = arith.constant 0.000000e+00 : f32
    %51 = vector.broadcast %cst_21 : f32 to vector<8x1xf32>
    %cst_22 = arith.constant -4.000000e-01 : f32
    %c0_i32 = arith.constant 0 : i32
    %52 = arith.index_cast %c0_i32 : i32 to index
    %c0_23 = arith.constant 0 : index
    %53 = vector.load %arg2[%52, %c0_23] : memref<8x8xf32, #tpu.memory_space<vmem>>, vector<1x8xf32>
    %54 = vector.broadcast %31 : vector<8x1xf32> to vector<8x8xf32>
    %55 = vector.broadcast %53 : vector<1x8xf32> to vector<8x8xf32>
    %56 = arith.subf %54, %55 : vector<8x8xf32>
    %cst_24 = arith.constant 0.000000e+00 : f32
    %57 = vector.broadcast %cst_24 : f32 to vector<8x8xf32>
    %58 = arith.minimumf %56, %57 : vector<8x8xf32>
    %cst_25 = arith.constant dense<0.000000e+00> : vector<8xf32>
    %59 = vector.multi_reduction <add>, %58, %cst_25 [1] : vector<8x8xf32> to vector<8xf32>
    %60 = vector.shape_cast %59 : vector<8xf32> to vector<8x1xf32>
    %61 = arith.addf %50, %60 : vector<8x1xf32>
    %62 = vector.broadcast %cst_22 : f32 to vector<8x8xf32>
    %63 = arith.cmpf ogt, %56, %62 : vector<8x8xf32>
    %cst_26 = arith.constant 1.000000e+00 : f32
    %cst_27 = arith.constant 0.000000e+00 : f32
    %64 = vector.broadcast %cst_26 : f32 to vector<8x8xf32>
    %65 = vector.broadcast %cst_27 : f32 to vector<8x8xf32>
    %66 = arith.select %63, %64, %65 : vector<8x8xi1>, vector<8x8xf32>
    %cst_28 = arith.constant dense<0.000000e+00> : vector<8xf32>
    %67 = vector.multi_reduction <add>, %66, %cst_28 [1] : vector<8x8xf32> to vector<8xf32>
    %68 = vector.shape_cast %67 : vector<8xf32> to vector<8x1xf32>
    %69 = arith.addf %51, %68 : vector<8x1xf32>
    %c1_i32 = arith.constant 1 : i32
    %70 = arith.index_cast %c1_i32 : i32 to index
    %c0_29 = arith.constant 0 : index
    %71 = vector.load %arg2[%70, %c0_29] : memref<8x8xf32, #tpu.memory_space<vmem>>, vector<1x8xf32>
    %72 = vector.broadcast %31 : vector<8x1xf32> to vector<8x8xf32>
    %73 = vector.broadcast %71 : vector<1x8xf32> to vector<8x8xf32>
    %74 = arith.subf %72, %73 : vector<8x8xf32>
    %cst_30 = arith.constant 0.000000e+00 : f32
    %75 = vector.broadcast %cst_30 : f32 to vector<8x8xf32>
    %76 = arith.minimumf %74, %75 : vector<8x8xf32>
    %cst_31 = arith.constant dense<0.000000e+00> : vector<8xf32>
    %77 = vector.multi_reduction <add>, %76, %cst_31 [1] : vector<8x8xf32> to vector<8xf32>
    %78 = vector.shape_cast %77 : vector<8xf32> to vector<8x1xf32>
    %79 = arith.addf %61, %78 : vector<8x1xf32>
    %80 = vector.broadcast %cst_22 : f32 to vector<8x8xf32>
    %81 = arith.cmpf ogt, %74, %80 : vector<8x8xf32>
    %cst_32 = arith.constant 1.000000e+00 : f32
    %cst_33 = arith.constant 0.000000e+00 : f32
    %82 = vector.broadcast %cst_32 : f32 to vector<8x8xf32>
    %83 = vector.broadcast %cst_33 : f32 to vector<8x8xf32>
    %84 = arith.select %81, %82, %83 : vector<8x8xi1>, vector<8x8xf32>
    %cst_34 = arith.constant dense<0.000000e+00> : vector<8xf32>
    %85 = vector.multi_reduction <add>, %84, %cst_34 [1] : vector<8x8xf32> to vector<8xf32>
    %86 = vector.shape_cast %85 : vector<8xf32> to vector<8x1xf32>
    %87 = arith.addf %69, %86 : vector<8x1xf32>
    %c2_i32 = arith.constant 2 : i32
    %88 = arith.index_cast %c2_i32 : i32 to index
    %c0_35 = arith.constant 0 : index
    %89 = vector.load %arg2[%88, %c0_35] : memref<8x8xf32, #tpu.memory_space<vmem>>, vector<1x8xf32>
    %90 = vector.broadcast %31 : vector<8x1xf32> to vector<8x8xf32>
    %91 = vector.broadcast %89 : vector<1x8xf32> to vector<8x8xf32>
    %92 = arith.subf %90, %91 : vector<8x8xf32>
    %cst_36 = arith.constant 0.000000e+00 : f32
    %93 = vector.broadcast %cst_36 : f32 to vector<8x8xf32>
    %94 = arith.minimumf %92, %93 : vector<8x8xf32>
    %cst_37 = arith.constant dense<0.000000e+00> : vector<8xf32>
    %95 = vector.multi_reduction <add>, %94, %cst_37 [1] : vector<8x8xf32> to vector<8xf32>
    %96 = vector.shape_cast %95 : vector<8xf32> to vector<8x1xf32>
    %97 = arith.addf %79, %96 : vector<8x1xf32>
    %98 = vector.broadcast %cst_22 : f32 to vector<8x8xf32>
    %99 = arith.cmpf ogt, %92, %98 : vector<8x8xf32>
    %cst_38 = arith.constant 1.000000e+00 : f32
    %cst_39 = arith.constant 0.000000e+00 : f32
    %100 = vector.broadcast %cst_38 : f32 to vector<8x8xf32>
    %101 = vector.broadcast %cst_39 : f32 to vector<8x8xf32>
    %102 = arith.select %99, %100, %101 : vector<8x8xi1>, vector<8x8xf32>
    %cst_40 = arith.constant dense<0.000000e+00> : vector<8xf32>
    %103 = vector.multi_reduction <add>, %102, %cst_40 [1] : vector<8x8xf32> to vector<8xf32>
    %104 = vector.shape_cast %103 : vector<8xf32> to vector<8x1xf32>
    %105 = arith.addf %87, %104 : vector<8x1xf32>
    %c3_i32 = arith.constant 3 : i32
    %106 = arith.index_cast %c3_i32 : i32 to index
    %c0_41 = arith.constant 0 : index
    %107 = vector.load %arg2[%106, %c0_41] : memref<8x8xf32, #tpu.memory_space<vmem>>, vector<1x8xf32>
    %108 = vector.broadcast %31 : vector<8x1xf32> to vector<8x8xf32>
    %109 = vector.broadcast %107 : vector<1x8xf32> to vector<8x8xf32>
    %110 = arith.subf %108, %109 : vector<8x8xf32>
    %cst_42 = arith.constant 0.000000e+00 : f32
    %111 = vector.broadcast %cst_42 : f32 to vector<8x8xf32>
    %112 = arith.minimumf %110, %111 : vector<8x8xf32>
    %cst_43 = arith.constant dense<0.000000e+00> : vector<8xf32>
    %113 = vector.multi_reduction <add>, %112, %cst_43 [1] : vector<8x8xf32> to vector<8xf32>
    %114 = vector.shape_cast %113 : vector<8xf32> to vector<8x1xf32>
    %115 = arith.addf %97, %114 : vector<8x1xf32>
    %116 = vector.broadcast %cst_22 : f32 to vector<8x8xf32>
    %117 = arith.cmpf ogt, %110, %116 : vector<8x8xf32>
    %cst_44 = arith.constant 1.000000e+00 : f32
    %cst_45 = arith.constant 0.000000e+00 : f32
    %118 = vector.broadcast %cst_44 : f32 to vector<8x8xf32>
    %119 = vector.broadcast %cst_45 : f32 to vector<8x8xf32>
    %120 = arith.select %117, %118, %119 : vector<8x8xi1>, vector<8x8xf32>
    %cst_46 = arith.constant dense<0.000000e+00> : vector<8xf32>
    %121 = vector.multi_reduction <add>, %120, %cst_46 [1] : vector<8x8xf32> to vector<8xf32>
    %122 = vector.shape_cast %121 : vector<8xf32> to vector<8x1xf32>
    %123 = arith.addf %105, %122 : vector<8x1xf32>
    %c4_i32 = arith.constant 4 : i32
    %124 = arith.index_cast %c4_i32 : i32 to index
    %c0_47 = arith.constant 0 : index
    %125 = vector.load %arg2[%124, %c0_47] : memref<8x8xf32, #tpu.memory_space<vmem>>, vector<1x8xf32>
    %126 = vector.broadcast %31 : vector<8x1xf32> to vector<8x8xf32>
    %127 = vector.broadcast %125 : vector<1x8xf32> to vector<8x8xf32>
    %128 = arith.subf %126, %127 : vector<8x8xf32>
    %cst_48 = arith.constant 0.000000e+00 : f32
    %129 = vector.broadcast %cst_48 : f32 to vector<8x8xf32>
    %130 = arith.minimumf %128, %129 : vector<8x8xf32>
    %cst_49 = arith.constant dense<0.000000e+00> : vector<8xf32>
    %131 = vector.multi_reduction <add>, %130, %cst_49 [1] : vector<8x8xf32> to vector<8xf32>
    %132 = vector.shape_cast %131 : vector<8xf32> to vector<8x1xf32>
    %133 = arith.addf %115, %132 : vector<8x1xf32>
    %134 = vector.broadcast %cst_22 : f32 to vector<8x8xf32>
    %135 = arith.cmpf ogt, %128, %134 : vector<8x8xf32>
    %cst_50 = arith.constant 1.000000e+00 : f32
    %cst_51 = arith.constant 0.000000e+00 : f32
    %136 = vector.broadcast %cst_50 : f32 to vector<8x8xf32>
    %137 = vector.broadcast %cst_51 : f32 to vector<8x8xf32>
    %138 = arith.select %135, %136, %137 : vector<8x8xi1>, vector<8x8xf32>
    %cst_52 = arith.constant dense<0.000000e+00> : vector<8xf32>
    %139 = vector.multi_reduction <add>, %138, %cst_52 [1] : vector<8x8xf32> to vector<8xf32>
    %140 = vector.shape_cast %139 : vector<8xf32> to vector<8x1xf32>
    %141 = arith.addf %123, %140 : vector<8x1xf32>
    %c5_i32 = arith.constant 5 : i32
    %142 = arith.index_cast %c5_i32 : i32 to index
    %c0_53 = arith.constant 0 : index
    %143 = vector.load %arg2[%142, %c0_53] : memref<8x8xf32, #tpu.memory_space<vmem>>, vector<1x8xf32>
    %144 = vector.broadcast %31 : vector<8x1xf32> to vector<8x8xf32>
    %145 = vector.broadcast %143 : vector<1x8xf32> to vector<8x8xf32>
    %146 = arith.subf %144, %145 : vector<8x8xf32>
    %cst_54 = arith.constant 0.000000e+00 : f32
    %147 = vector.broadcast %cst_54 : f32 to vector<8x8xf32>
    %148 = arith.minimumf %146, %147 : vector<8x8xf32>
    %cst_55 = arith.constant dense<0.000000e+00> : vector<8xf32>
    %149 = vector.multi_reduction <add>, %148, %cst_55 [1] : vector<8x8xf32> to vector<8xf32>
    %150 = vector.shape_cast %149 : vector<8xf32> to vector<8x1xf32>
    %151 = arith.addf %133, %150 : vector<8x1xf32>
    %152 = vector.broadcast %cst_22 : f32 to vector<8x8xf32>
    %153 = arith.cmpf ogt, %146, %152 : vector<8x8xf32>
    %cst_56 = arith.constant 1.000000e+00 : f32
    %cst_57 = arith.constant 0.000000e+00 : f32
    %154 = vector.broadcast %cst_56 : f32 to vector<8x8xf32>
    %155 = vector.broadcast %cst_57 : f32 to vector<8x8xf32>
    %156 = arith.select %153, %154, %155 : vector<8x8xi1>, vector<8x8xf32>
    %cst_58 = arith.constant dense<0.000000e+00> : vector<8xf32>
    %157 = vector.multi_reduction <add>, %156, %cst_58 [1] : vector<8x8xf32> to vector<8xf32>
    %158 = vector.shape_cast %157 : vector<8xf32> to vector<8x1xf32>
    %159 = arith.addf %141, %158 : vector<8x1xf32>
    %c6_i32 = arith.constant 6 : i32
    %160 = arith.index_cast %c6_i32 : i32 to index
    %c0_59 = arith.constant 0 : index
    %161 = vector.load %arg2[%160, %c0_59] : memref<8x8xf32, #tpu.memory_space<vmem>>, vector<1x8xf32>
    %162 = vector.broadcast %31 : vector<8x1xf32> to vector<8x8xf32>
    %163 = vector.broadcast %161 : vector<1x8xf32> to vector<8x8xf32>
    %164 = arith.subf %162, %163 : vector<8x8xf32>
    %cst_60 = arith.constant 0.000000e+00 : f32
    %165 = vector.broadcast %cst_60 : f32 to vector<8x8xf32>
    %166 = arith.minimumf %164, %165 : vector<8x8xf32>
    %cst_61 = arith.constant dense<0.000000e+00> : vector<8xf32>
    %167 = vector.multi_reduction <add>, %166, %cst_61 [1] : vector<8x8xf32> to vector<8xf32>
    %168 = vector.shape_cast %167 : vector<8xf32> to vector<8x1xf32>
    %169 = arith.addf %151, %168 : vector<8x1xf32>
    %170 = vector.broadcast %cst_22 : f32 to vector<8x8xf32>
    %171 = arith.cmpf ogt, %164, %170 : vector<8x8xf32>
    %cst_62 = arith.constant 1.000000e+00 : f32
    %cst_63 = arith.constant 0.000000e+00 : f32
    %172 = vector.broadcast %cst_62 : f32 to vector<8x8xf32>
    %173 = vector.broadcast %cst_63 : f32 to vector<8x8xf32>
    %174 = arith.select %171, %172, %173 : vector<8x8xi1>, vector<8x8xf32>
    %cst_64 = arith.constant dense<0.000000e+00> : vector<8xf32>
    %175 = vector.multi_reduction <add>, %174, %cst_64 [1] : vector<8x8xf32> to vector<8xf32>
    %176 = vector.shape_cast %175 : vector<8xf32> to vector<8x1xf32>
    %177 = arith.addf %159, %176 : vector<8x1xf32>
    %c7_i32 = arith.constant 7 : i32
    %178 = arith.index_cast %c7_i32 : i32 to index
    %c0_65 = arith.constant 0 : index
    %179 = vector.load %arg2[%178, %c0_65] : memref<8x8xf32, #tpu.memory_space<vmem>>, vector<1x8xf32>
    %180 = vector.broadcast %31 : vector<8x1xf32> to vector<8x8xf32>
    %181 = vector.broadcast %179 : vector<1x8xf32> to vector<8x8xf32>
    %182 = arith.subf %180, %181 : vector<8x8xf32>
    %cst_66 = arith.constant 0.000000e+00 : f32
    %183 = vector.broadcast %cst_66 : f32 to vector<8x8xf32>
    %184 = arith.minimumf %182, %183 : vector<8x8xf32>
    %cst_67 = arith.constant dense<0.000000e+00> : vector<8xf32>
    %185 = vector.multi_reduction <add>, %184, %cst_67 [1] : vector<8x8xf32> to vector<8xf32>
    %186 = vector.shape_cast %185 : vector<8xf32> to vector<8x1xf32>
    %187 = arith.addf %169, %186 : vector<8x1xf32>
    %188 = vector.broadcast %cst_22 : f32 to vector<8x8xf32>
    %189 = arith.cmpf ogt, %182, %188 : vector<8x8xf32>
    %cst_68 = arith.constant 1.000000e+00 : f32
    %cst_69 = arith.constant 0.000000e+00 : f32
    %190 = vector.broadcast %cst_68 : f32 to vector<8x8xf32>
    %191 = vector.broadcast %cst_69 : f32 to vector<8x8xf32>
    %192 = arith.select %189, %190, %191 : vector<8x8xi1>, vector<8x8xf32>
    %cst_70 = arith.constant dense<0.000000e+00> : vector<8xf32>
    %193 = vector.multi_reduction <add>, %192, %cst_70 [1] : vector<8x8xf32> to vector<8xf32>
    %194 = vector.shape_cast %193 : vector<8xf32> to vector<8x1xf32>
    %195 = arith.addf %177, %194 : vector<8x1xf32>
    %c8_i32 = arith.constant 8 : i32
    %196 = vector.shape_cast %187 : vector<8x1xf32> to vector<1x8x1xf32>
    %cst_71 = arith.constant dense<0.000000e+00> : vector<1xf32>
    %197 = vector.multi_reduction <add>, %196, %cst_71 [1, 2] : vector<1x8x1xf32> to vector<1xf32>
    %198 = vector.shape_cast %197 : vector<1xf32> to vector<1x1x1xf32>
    %199 = vector.extract %198[0, 0, 0] : f32 from vector<1x1x1xf32>
    %200 = vector.shape_cast %195 : vector<8x1xf32> to vector<1x8x1xf32>
    %cst_72 = arith.constant dense<0.000000e+00> : vector<1xf32>
    %201 = vector.multi_reduction <add>, %200, %cst_72 [1, 2] : vector<1x8x1xf32> to vector<1xf32>
    %202 = vector.shape_cast %201 : vector<1xf32> to vector<1x1x1xf32>
    %203 = vector.extract %202[0, 0, 0] : f32 from vector<1x1x1xf32>
    %cst_73 = arith.constant 0.000000e+00 : f32
    %204 = vector.broadcast %cst_73 : f32 to vector<8x8xf32>
    %205 = arith.select %34, %204, %25 : vector<8x8xi1>, vector<8x8xf32>
    %cst_74 = arith.constant dense<0.000000e+00> : vector<8xf32>
    %206 = vector.multi_reduction <add>, %205, %cst_74 [0] : vector<8x8xf32> to vector<8xf32>
    %207 = vector.shape_cast %206 : vector<8xf32> to vector<1x8xf32>
    %208 = vector.broadcast %31 : vector<8x1xf32> to vector<8x8xf32>
    %209 = vector.broadcast %207 : vector<1x8xf32> to vector<8x8xf32>
    %210 = arith.subf %208, %209 : vector<8x8xf32>
    %cst_75 = arith.constant 0.000000e+00 : f32
    %211 = vector.broadcast %cst_75 : f32 to vector<8x8xf32>
    %212 = arith.minimumf %210, %211 : vector<8x8xf32>
    %213 = vector.shape_cast %212 : vector<8x8xf32> to vector<1x8x8xf32>
    %cst_76 = arith.constant dense<0.000000e+00> : vector<1xf32>
    %214 = vector.multi_reduction <add>, %213, %cst_76 [1, 2] : vector<1x8x8xf32> to vector<1xf32>
    %215 = vector.shape_cast %214 : vector<1xf32> to vector<1x1x1xf32>
    %216 = vector.extract %215[0, 0, 0] : f32 from vector<1x1x1xf32>
    %cst_77 = arith.constant -4.000000e-01 : f32
    %217 = vector.broadcast %cst_77 : f32 to vector<8x8xf32>
    %218 = arith.cmpf ogt, %210, %217 : vector<8x8xf32>
    %cst_78 = arith.constant 1.000000e+00 : f32
    %cst_79 = arith.constant 0.000000e+00 : f32
    %219 = vector.broadcast %cst_78 : f32 to vector<8x8xf32>
    %220 = vector.broadcast %cst_79 : f32 to vector<8x8xf32>
    %221 = arith.select %218, %219, %220 : vector<8x8xi1>, vector<8x8xf32>
    %222 = vector.shape_cast %221 : vector<8x8xf32> to vector<1x8x8xf32>
    %cst_80 = arith.constant dense<0.000000e+00> : vector<1xf32>
    %223 = vector.multi_reduction <add>, %222, %cst_80 [1, 2] : vector<1x8x8xf32> to vector<1xf32>
    %224 = vector.shape_cast %223 : vector<1xf32> to vector<1x1x1xf32>
    %225 = vector.extract %224[0, 0, 0] : f32 from vector<1x1x1xf32>
    %226 = arith.subf %199, %216 : f32
    %227 = arith.subf %203, %225 : f32
    %cst_81 = arith.constant 8.000000e+00 : f32
    %cst_82 = arith.constant 8.000000e+00 : f32
    %228 = arith.mulf %cst_81, %cst_82 : f32
    %cst_83 = arith.constant 7.000000e+00 : f32
    %229 = arith.mulf %228, %cst_83 : f32
    %cst_84 = arith.constant 0.000000e+00 : f32
    %230 = arith.subf %cst_84, %226 : f32
    %231 = arith.divf %230, %229 : f32
    %c0_85 = arith.constant 0 : index
    %c0_86 = arith.constant 0 : index
    %232 = memref.load %arg1[%c0_85, %c0_86] : memref<1x3xf32, #tpu.memory_space<smem>>
    memref.store %231, %arg1[%c0_85, %c0_86] : memref<1x3xf32, #tpu.memory_space<smem>>
    %cst_87 = arith.constant 1.000000e+02 : f32
    %233 = arith.mulf %cst_87, %227 : f32
    %234 = arith.divf %233, %229 : f32
    %c0_88 = arith.constant 0 : index
    %c1_89 = arith.constant 1 : index
    %235 = memref.load %arg1[%c0_88, %c1_89] : memref<1x3xf32, #tpu.memory_space<smem>>
    memref.store %234, %arg1[%c0_88, %c1_89] : memref<1x3xf32, #tpu.memory_space<smem>>
    %cst_90 = arith.constant 1.000000e+02 : f32
    %236 = arith.mulf %cst_90, %49 : f32
    %cst_91 = arith.constant 8.000000e+00 : f32
    %237 = arith.divf %236, %cst_91 : f32
    %c0_92 = arith.constant 0 : index
    %c2_93 = arith.constant 2 : index
    %238 = memref.load %arg1[%c0_92, %c2_93] : memref<1x3xf32, #tpu.memory_space<smem>>
    memref.store %237, %arg1[%c0_92, %c2_93] : memref<1x3xf32, #tpu.memory_space<smem>>
    return
  }
}

</mosaic_0001>

<llo_original>
// kernel: tpu_custom_call.1
$region0: #{tpu_custom_call.1}
  #allocation0 [shape = 'u32[]', space=smem, size = 0x4, offset = 0x4, fixed_abs, tag = 'smem constant byte address 0x4 - core index']
  #allocation1 [shape = 'u32[144,128]{1,0:T(1,128)}', space=vmem, size = 0x12000, scoped, tag = 'internal scratch']
  #allocation2 [shape = 'f32[8,8]{1,0:T(8,128)}', space=vmem, size = 0x1000, scoped, tag = 'scratch operand']
  %s0 = inlined_call_operand.vmem [shape: f32[8,3,32], index: 0, kind: input, shape index: {}]
  %s1 = inlined_call_operand.hbm [shape: f32[1,3], index: 1, kind: output, shape index: {}]
  %s2 = sld [smem:[#allocation0]]
  $region14: #{tpu_custom_call.1} parent=0
    _
  %s4 = ssub.s32 1, %s2
  %s5 = scalar_select 0, %s4, %s2
  $region1: #{tpu_custom_call.1} parent=0
    #allocation3 [shape = 'u8[512]{0}', space=smem, size = 0x200, scoped, tag = 'output window, operand 0, single buffered']
    #allocation4 [shape = 's32[1]{0}', space=sflag, size = 0x4, scoped, tag = 'scoped memory for tpu_custom_call.1']
    %6 = vsyncpa [#allocation4], 0
    // Predicated region
    $region2: #{tpu_custom_call.1} parent=1 // pred_check
      _
    $region3: #{tpu_custom_call.1} parent=1 // pred_check_branch
      %8 = sbr.rel (0) target = $region5
    $region4: #{tpu_custom_call.1} parent=1 // pred_region
      _
    $region5: #{tpu_custom_call.1} parent=1 // pred_fallthru
      _
    %v9 = vld [vmem:[%s0] sm:$0x1]
    %v10 = vld [vmem:[%s0 + $0x4] sm:$0x1]
    %v11 = vld [vmem:[%s0 + $0x8] sm:$0x1]
    %v12 = vld [vmem:[%s0 + $0xc] sm:$0x1]
    %v13 = vld [vmem:[%s0 + $0x10] sm:$0x1]
    %v14 = vld [vmem:[%s0 + $0x14] sm:$0x1]
    %v15 = vld [vmem:[%s0 + $0x18] sm:$0x1]
    %v16 = vld [vmem:[%s0 + $0x1c] sm:$0x1]
    %v17 = vld [vmem:[%s0 + $0x1] sm:$0x1]
    %v18 = vld [vmem:[%s0 + $0x5] sm:$0x1]
    %v19 = vld [vmem:[%s0 + $0x9] sm:$0x1]
    %v20 = vld [vmem:[%s0 + $0xd] sm:$0x1]
    %v21 = vld [vmem:[%s0 + $0x11] sm:$0x1]
    %v22 = vld [vmem:[%s0 + $0x15] sm:$0x1]
    %v23 = vld [vmem:[%s0 + $0x19] sm:$0x1]
    %v24 = vld [vmem:[%s0 + $0x1d] sm:$0x1]
    %v25 = vld [vmem:[%s0 + $0x2] sm:$0x1]
    %v26 = vld [vmem:[%s0 + $0x6] sm:$0x1]
    %v27 = vld [vmem:[%s0 + $0xa] sm:$0x1]
    %v28 = vld [vmem:[%s0 + $0xe] sm:$0x1]
    %v29 = vld [vmem:[%s0 + $0x12] sm:$0x1]
    %v30 = vld [vmem:[%s0 + $0x16] sm:$0x1]
    %v31 = vld [vmem:[%s0 + $0x1a] sm:$0x1]
    %v32 = vld [vmem:[%s0 + $0x1e] sm:$0x1]
    %v33 = vadd.f32 %v17, %v25
    %v34 = vadd.f32 %v18, %v26
    %v35 = vadd.f32 %v19, %v27
    %v36 = vadd.f32 %v20, %v28
    %v37 = vadd.f32 %v21, %v29
    %v38 = vadd.f32 %v22, %v30
    %v39 = vadd.f32 %v23, %v31
    %v40 = vadd.f32 %v24, %v32
    %v41 = vmul.f32 %v33, 0.5
    %v42 = vmul.f32 %v34, 0.5
    %v43 = vmul.f32 %v35, 0.5
    %v44 = vmul.f32 %v36, 0.5
    %v45 = vmul.f32 %v37, 0.5
    %v46 = vmul.f32 %v38, 0.5
    %v47 = vmul.f32 %v39, 0.5
    %v48 = vmul.f32 %v40, 0.5
    %v49 = vmul.f32 %v9, %v9
    %v50 = vmul.f32 %v10, %v10
    %v51 = vmul.f32 %v11, %v11
    %v52 = vmul.f32 %v12, %v12
    %v53 = vmul.f32 %v13, %v13
    %v54 = vmul.f32 %v14, %v14
    %v55 = vmul.f32 %v15, %v15
    %v56 = vmul.f32 %v16, %v16
    %v65 = vrot.slane %v50, 7
    %vm66 = vcmask 1041409
    %v67 = vsel %vm66, %v65, %v49
    %v68 = vrot.slane %v51, 6
    %vm69 = vcmask 1042434
    %v70 = vsel %vm69, %v68, %v67
    %v71 = vrot.slane %v52, 5
    %vm72 = vcmask 1043459
    %v73 = vsel %vm72, %v71, %v70
    %v74 = vrot.slane %v53, 4
    %vm75 = vcmask 1044484
    %v76 = vsel %vm75, %v74, %v73
    %v77 = vrot.slane %v54, 3
    %vm78 = vcmask 1045509
    %v79 = vsel %vm78, %v77, %v76
    %v80 = vrot.slane %v55, 2
    %vm81 = vcmask 1046534
    %v82 = vsel %vm81, %v80, %v79
    %v83 = vrot.slane %v56, 1
    %vm84 = vcmask 1047559
    %v85 = vsel %vm84, %v83, %v82
    %vm87 = vcmask 261120
    %v88 = vsel %vm87, %v85, 0.0
    %89 = vadd.xlane.f32.xlu0 %v88
    %v90 = vpop.xlane.xlu0 %89
    %v91 = vmul.f32 %v41, %v41
    %v92 = vmul.f32 %v42, %v42
    %v93 = vmul.f32 %v43, %v43
    %v94 = vmul.f32 %v44, %v44
    %v95 = vmul.f32 %v45, %v45
    %v96 = vmul.f32 %v46, %v46
    %v97 = vmul.f32 %v47, %v47
    %v98 = vmul.f32 %v48, %v48
    %v107 = vrot.slane %v92, 7
    %v108 = vsel %vm66, %v107, %v91
    %v109 = vrot.slane %v93, 6
    %v110 = vsel %vm69, %v109, %v108
    %v111 = vrot.slane %v94, 5
    %v112 = vsel %vm72, %v111, %v110
    %v113 = vrot.slane %v95, 4
    %v114 = vsel %vm75, %v113, %v112
    %v115 = vrot.slane %v96, 3
    %v116 = vsel %vm78, %v115, %v114
    %v117 = vrot.slane %v97, 2
    %v118 = vsel %vm81, %v117, %v116
    %v119 = vrot.slane %v98, 1
    %v120 = vsel %vm84, %v119, %v118
    %v122 = vsel %vm87, %v120, 0.0
    %123 = vadd.xlane.f32.xlu0 %v122
    %v124 = vpop.xlane.xlu0 %123
    %v125 = vmax.f32 %v90, 1e-16
    %v126 = vrsqrt.pop %v125
    %v128 = vrot.slane %v126, 1
    %v129 = vrot.slane %v126, 2
    %v130 = vrot.slane %v126, 3
    %v131 = vrot.slane %v126, 4
    %v132 = vrot.slane %v126, 5
    %v133 = vrot.slane %v126, 6
    %v134 = vrot.slane %v126, 7
    %v143 = vmul.f32 %v9, %v126
    %v144 = vmul.f32 %v10, %v128
    %v145 = vmul.f32 %v11, %v129
    %v146 = vmul.f32 %v12, %v130
    %v147 = vmul.f32 %v13, %v131
    %v148 = vmul.f32 %v14, %v132
    %v149 = vmul.f32 %v15, %v133
    %v150 = vmul.f32 %v16, %v134
    %v151 = vmax.f32 %v124, 1e-16
    %v152 = vrsqrt.pop %v151
    %v154 = vrot.slane %v152, 1
    %v155 = vrot.slane %v152, 2
    %v156 = vrot.slane %v152, 3
    %v157 = vrot.slane %v152, 4
    %v158 = vrot.slane %v152, 5
    %v159 = vrot.slane %v152, 6
    %v160 = vrot.slane %v152, 7
    %v169 = vmul.f32 %v41, %v152
    %v170 = vmul.f32 %v42, %v154
    %v171 = vmul.f32 %v43, %v155
    %v172 = vmul.f32 %v44, %v156
    %v173 = vmul.f32 %v45, %v157
    %v174 = vmul.f32 %v46, %v158
    %v175 = vmul.f32 %v47, %v159
    %v176 = vmul.f32 %v48, %v160
    %v185 = vrot.slane %v144, 7
    %v186 = vsel %vm66, %v185, %v143
    %v187 = vrot.slane %v145, 6
    %v188 = vsel %vm69, %v187, %v186
    %v189 = vrot.slane %v146, 5
    %v190 = vsel %vm72, %v189, %v188
    %v191 = vrot.slane %v147, 4
    %v192 = vsel %vm75, %v191, %v190
    %v193 = vrot.slane %v148, 3
    %v194 = vsel %vm78, %v193, %v192
    %v195 = vrot.slane %v149, 2
    %v196 = vsel %vm81, %v195, %v194
    %v197 = vrot.slane %v150, 1
    %v198 = vsel %vm84, %v197, %v196
    %v207 = vrot.slane %v170, 7
    %v208 = vsel %vm66, %v207, %v169
    %v209 = vrot.slane %v171, 6
    %v210 = vsel %vm69, %v209, %v208
    %v211 = vrot.slane %v172, 5
    %v212 = vsel %vm72, %v211, %v210
    %v213 = vrot.slane %v173, 4
    %v214 = vsel %vm75, %v213, %v212
    %v215 = vrot.slane %v174, 3
    %v216 = vsel %vm78, %v215, %v214
    %v217 = vrot.slane %v175, 2
    %v218 = vsel %vm81, %v217, %v216
    %v219 = vrot.slane %v176, 1
    %v220 = vsel %vm84, %v219, %v218
    %v221 = vsel %vm87, %v198, 0
    %v223 = vsel %vm87, %v220, 0
    %225 = vmatprep.subr.mxu0 0.0
    %226 = vmatpush1.xpose.msra.mxu0 0.0
    %227 = vmatprep.subr.mxu0 0.0
    %228 = vmatpush1.xpose.msra.mxu0 0.0
    %229 = vmatprep.subr.mxu0 0.0
    %230 = vmatpush1.xpose.msra.mxu0 0.0
    %231 = vmatprep.subr.mxu0 0.0
    %232 = vmatpush1.xpose.msra.mxu0 0.0
    %233 = vmatprep.subr.mxu0 0.0
    %234 = vmatpush1.xpose.msra.mxu0 0.0
    %235 = vmatprep.subr.mxu0 0.0
    %236 = vmatpush1.xpose.msra.mxu0 0.0
    %237 = vmatprep.subr.mxu0 0.0
    %238 = vmatpush1.xpose.msra.mxu0 0.0
    %239 = vmatprep.subr.mxu0 0.0
    %240 = vmatpush1.xpose.msra.mxu0 0.0
    %241 = vmatprep.subr.mxu0 0.0
    %242 = vmatpush1.xpose.msra.mxu0 0.0
    %243 = vmatprep.subr.mxu0 0.0
    %244 = vmatpush1.xpose.msra.mxu0 0.0
    %245 = vmatprep.subr.mxu0 0.0
    %246 = vmatpush1.xpose.msra.mxu0 0.0
    %247 = vmatprep.subr.mxu0 0.0
    %248 = vmatpush1.xpose.msra.mxu0 0.0
    %249 = vmatprep.subr.mxu0 0.0
    %250 = vmatpush1.xpose.msra.mxu0 0.0
    %251 = vmatprep.subr.mxu0 0.0
    %252 = vmatpush1.xpose.msra.mxu0 0.0
    %253 = vmatprep.subr.mxu0 0.0
    %254 = vmatpush1.xpose.msra.mxu0 0.0
    %255 = vmatprep.subr.mxu0 0.0
    %256 = vmatpush1.xpose.msra.mxu0 %v223
    %257 = vmatprep.subr.mxu0 0.0
    %258 = vmatpush2.xpose.msra.mxu0 0.0
    %259 = vmatprep.subr.mxu0 0.0
    %260 = vmatpush2.xpose.msra.mxu0 0.0
    %261 = vmatprep.subr.mxu0 0.0
    %262 = vmatpush2.xpose.msra.mxu0 0.0
    %263 = vmatprep.subr.mxu0 0.0
    %264 = vmatpush2.xpose.msra.mxu0 0.0
    %265 = vmatprep.subr.mxu0 0.0
    %266 = vmatpush2.xpose.msra.mxu0 0.0
    %267 = vmatprep.subr.mxu0 0.0
    %268 = vmatpush2.xpose.msra.mxu0 0.0
    %269 = vmatprep.subr.mxu0 0.0
    %270 = vmatpush2.xpose.msra.mxu0 0.0
    %271 = vmatprep.subr.mxu0 0.0
    %272 = vmatpush2.xpose.msra.mxu0 0.0
    %273 = vmatprep.subr.mxu0 0.0
    %274 = vmatpush2.xpose.msra.mxu0 0.0
    %275 = vmatprep.subr.mxu0 0.0
    %276 = vmatpush2.xpose.msra.mxu0 0.0
    %277 = vmatprep.subr.mxu0 0.0
    %278 = vmatpush2.xpose.msra.mxu0 0.0
    %279 = vmatprep.subr.mxu0 0.0
    %280 = vmatpush2.xpose.msra.mxu0 0.0
    %281 = vmatprep.subr.mxu0 0.0
    %282 = vmatpush2.xpose.msra.mxu0 0.0
    %283 = vmatprep.subr.mxu0 0.0
    %284 = vmatpush2.xpose.msra.mxu0 0.0
    %285 = vmatprep.subr.mxu0 0.0
    %286 = vmatpush2.xpose.msra.mxu0 0.0
    %287 = vmatprep.subr.mxu0 0.0
    %288 = vmatpush2.xpose.msra.mxu0 0.0
    %289 = vmatprep.mubr.f32.mxu0 0.0
    %290 = vmatmul.mubr.f32.gmra.mxu0 %v221
    %v291 = vpop.f32.mrf.mxu0
    %v292 = vadd.f32 0.0, %v291
    %v293 = vpop.f32.mrf.mxu0
    %294 = vdwg.mxu0
    %vm295 = vcmask 64512
    %296 = vst.msk [vmem:[#allocation2] sm:$0xff] %vm295, %v292
    %v297 = vmul.f32 %v143, %v169
    %v298 = vmul.f32 %v144, %v170
    %v299 = vmul.f32 %v145, %v171
    %v300 = vmul.f32 %v146, %v172
    %v301 = vmul.f32 %v147, %v173
    %v302 = vmul.f32 %v148, %v174
    %v303 = vmul.f32 %v149, %v175
    %v304 = vmul.f32 %v150, %v176
    %v313 = vrot.slane %v298, 7
    %v314 = vsel %vm66, %v313, %v297
    %v315 = vrot.slane %v299, 6
    %v316 = vsel %vm69, %v315, %v314
    %v317 = vrot.slane %v300, 5
    %v318 = vsel %vm72, %v317, %v316
    %v319 = vrot.slane %v301, 4
    %v320 = vsel %vm75, %v319, %v318
    %v321 = vrot.slane %v302, 3
    %v322 = vsel %vm78, %v321, %v320
    %v323 = vrot.slane %v303, 2
    %v324 = vsel %vm81, %v323, %v322
    %v325 = vrot.slane %v304, 1
    %v326 = vsel %vm84, %v325, %v324
    %v328 = vsel %vm87, %v326, 0.0
    %329 = vadd.xlane.f32.xlu0 %v328
    %v330 = vpop.xlane.xlu0 %329
    %v331 = vsub.f32 %v330, 0.4
    %v332 = vlaneseq
    %v333 = vshrl.u32 %v332, 7
    %v334 = vlaneseq
    %v335 = vand.u32 %v334, 127
    %vm336 = vcmp.ne.s32.totalorder %v333, %v335
    %v337 = vsel %vm336, %v292, -inf
    %v338 = vsel %vm295, %v337, -inf
    %339 = vmax.xlane.f32.xlu0 %v338
    %v340 = vpop.xlane.xlu0 %339
    %v341 = vrot.slane %v340, 4
    %v342 = vmax.f32 %v340, %v341
    %v343 = vrot.slane %v342, 2
    %v344 = vmax.f32 %v342, %v343
    %v345 = vrot.slane %v344, 1
    %v346 = vmax.f32 %v344, %v345
    %s347 = vtos %v346
    %v348 = vstv %s347
    %vm349 = vcmp.ge.f32.partialorder %v330, %v348
    %v350 = vsel %vm349, 1.0, 0.0
    %vm351 = vcmask 7168
    %v352 = vsel %vm351, %v350, 0.0
    %353 = vadd.xlane.f32.xlu0 %v352
    %v354 = vpop.xlane.xlu0 %353
    %v355 = vrot.slane %v354, 4
    %v356 = vadd.f32 %v354, %v355
    %v357 = vrot.slane %v356, 2
    %v358 = vadd.f32 %v356, %v357
    %v359 = vrot.slane %v358, 1
    %v360 = vadd.f32 %v358, %v359
    %s361 = vtos %v360
    %v362 = vld [vmem:[#allocation2] sm:$0x1]
    %v363 = vlaneseq
    %v364 = vshrl.u32 %v363, 7
    %v365 = vsub.s32 0, %v364
    %v366 = vrot.slane %v362, %v365
    %v367 = vsub.f32 %v331, %v366
    %v368 = vmin.f32 %v367, 0.0
    %v369 = vsel %vm295, %v368, 0.0
    %370 = vadd.xlane.f32.xlu0 %v369
    %v371 = vpop.xlane.xlu0 %370
    %v372 = vadd.f32 %v371, 0.0
    %vm373 = vcmp.gt.f32.partialorder %v367, -0.4
    %v374 = vsel %vm373, 1.0, 0.0
    %v375 = vsel %vm295, %v374, 0.0
    %376 = vadd.xlane.f32.xlu0 %v375
    %v377 = vpop.xlane.xlu0 %376
    %v378 = vadd.f32 %v377, 0.0
    %v379 = vld [vmem:[#allocation2 + $0x1] sm:$0x1]
    %v380 = vlaneseq
    %v381 = vshrl.u32 %v380, 7
    %v382 = vsub.s32 0, %v381
    %v383 = vrot.slane %v379, %v382
    %v384 = vsub.f32 %v331, %v383
    %v385 = vmin.f32 %v384, 0.0
    %v386 = vsel %vm295, %v385, 0.0
    %387 = vadd.xlane.f32.xlu0 %v386
    %v388 = vpop.xlane.xlu0 %387
    %v389 = vadd.f32 %v372, %v388
    %vm390 = vcmp.gt.f32.partialorder %v384, -0.4
    %v391 = vsel %vm390, 1.0, 0.0
    %v392 = vsel %vm295, %v391, 0.0
    %393 = vadd.xlane.f32.xlu0 %v392
    %v394 = vpop.xlane.xlu0 %393
    %v395 = vadd.f32 %v378, %v394
    %v396 = vld [vmem:[#allocation2 + $0x2] sm:$0x1]
    %v397 = vlaneseq
    %v398 = vshrl.u32 %v397, 7
    %v399 = vsub.s32 0, %v398
    %v400 = vrot.slane %v396, %v399
    %v401 = vsub.f32 %v331, %v400
    %v402 = vmin.f32 %v401, 0.0
    %v403 = vsel %vm295, %v402, 0.0
    %404 = vadd.xlane.f32.xlu0 %v403
    %v405 = vpop.xlane.xlu0 %404
    %v406 = vadd.f32 %v389, %v405
    %vm407 = vcmp.gt.f32.partialorder %v401, -0.4
    %v408 = vsel %vm407, 1.0, 0.0
    %v409 = vsel %vm295, %v408, 0.0
    %410 = vadd.xlane.f32.xlu0 %v409
    %v411 = vpop.xlane.xlu0 %410
    %v412 = vadd.f32 %v395, %v411
    %v413 = vld [vmem:[#allocation2 + $0x3] sm:$0x1]
    %v414 = vlaneseq
    %v415 = vshrl.u32 %v414, 7
    %v416 = vsub.s32 0, %v415
    %v417 = vrot.slane %v413, %v416
    %v418 = vsub.f32 %v331, %v417
    %v419 = vmin.f32 %v418, 0.0
    %v420 = vsel %vm295, %v419, 0.0
    %421 = vadd.xlane.f32.xlu0 %v420
    %v422 = vpop.xlane.xlu0 %421
    %v423 = vadd.f32 %v406, %v422
    %vm424 = vcmp.gt.f32.partialorder %v418, -0.4
    %v425 = vsel %vm424, 1.0, 0.0
    %v426 = vsel %vm295, %v425, 0.0
    %427 = vadd.xlane.f32.xlu0 %v426
    %v428 = vpop.xlane.xlu0 %427
    %v429 = vadd.f32 %v412, %v428
    %v430 = vld [vmem:[#allocation2 + $0x4] sm:$0x1]
    %v431 = vlaneseq
    %v432 = vshrl.u32 %v431, 7
    %v433 = vsub.s32 0, %v432
    %v434 = vrot.slane %v430, %v433
    %v435 = vsub.f32 %v331, %v434
    %v436 = vmin.f32 %v435, 0.0
    %v437 = vsel %vm295, %v436, 0.0
    %438 = vadd.xlane.f32.xlu0 %v437
    %v439 = vpop.xlane.xlu0 %438
    %v440 = vadd.f32 %v423, %v439
    %vm441 = vcmp.gt.f32.partialorder %v435, -0.4
    %v442 = vsel %vm441, 1.0, 0.0
    %v443 = vsel %vm295, %v442, 0.0
    %444 = vadd.xlane.f32.xlu0 %v443
    %v445 = vpop.xlane.xlu0 %444
    %v446 = vadd.f32 %v429, %v445
    %v447 = vld [vmem:[#allocation2 + $0x5] sm:$0x1]
    %v448 = vlaneseq
    %v449 = vshrl.u32 %v448, 7
    %v450 = vsub.s32 0, %v449
    %v451 = vrot.slane %v447, %v450
    %v452 = vsub.f32 %v331, %v451
    %v453 = vmin.f32 %v452, 0.0
    %v454 = vsel %vm295, %v453, 0.0
    %455 = vadd.xlane.f32.xlu0 %v454
    %v456 = vpop.xlane.xlu0 %455
    %v457 = vadd.f32 %v440, %v456
    %vm458 = vcmp.gt.f32.partialorder %v452, -0.4
    %v459 = vsel %vm458, 1.0, 0.0
    %v460 = vsel %vm295, %v459, 0.0
    %461 = vadd.xlane.f32.xlu0 %v460
    %v462 = vpop.xlane.xlu0 %461
    %v463 = vadd.f32 %v446, %v462
    %v464 = vld [vmem:[#allocation2 + $0x6] sm:$0x1]
    %v465 = vlaneseq
    %v466 = vshrl.u32 %v465, 7
    %v467 = vsub.s32 0, %v466
    %v468 = vrot.slane %v464, %v467
    %v469 = vsub.f32 %v331, %v468
    %v470 = vmin.f32 %v469, 0.0
    %v471 = vsel %vm295, %v470, 0.0
    %472 = vadd.xlane.f32.xlu0 %v471
    %v473 = vpop.xlane.xlu0 %472
    %v474 = vadd.f32 %v457, %v473
    %vm475 = vcmp.gt.f32.partialorder %v469, -0.4
    %v476 = vsel %vm475, 1.0, 0.0
    %v477 = vsel %vm295, %v476, 0.0
    %478 = vadd.xlane.f32.xlu0 %v477
    %v479 = vpop.xlane.xlu0 %478
    %v480 = vadd.f32 %v463, %v479
    %v481 = vld [vmem:[#allocation2 + $0x7] sm:$0x1]
    %v482 = vlaneseq
    %v483 = vshrl.u32 %v482, 7
    %v484 = vsub.s32 0, %v483
    %v485 = vrot.slane %v481, %v484
    %v486 = vsub.f32 %v331, %v485
    %v487 = vmin.f32 %v486, 0.0
    %v488 = vsel %vm295, %v487, 0.0
    %489 = vadd.xlane.f32.xlu0 %v488
    %v490 = vpop.xlane.xlu0 %489
    %v491 = vadd.f32 %v474, %v490
    %vm492 = vcmp.gt.f32.partialorder %v486, -0.4
    %v493 = vsel %vm492, 1.0, 0.0
    %v494 = vsel %vm295, %v493, 0.0
    %495 = vadd.xlane.f32.xlu0 %v494
    %v496 = vpop.xlane.xlu0 %495
    %v497 = vadd.f32 %v480, %v496
    %v498 = vsel %vm351, %v491, 0.0
    %499 = vadd.xlane.f32.xlu0 %v498
    %v500 = vpop.xlane.xlu0 %499
    %v501 = vrot.slane %v500, 4
    %v502 = vadd.f32 %v500, %v501
    %v503 = vrot.slane %v502, 2
    %v504 = vadd.f32 %v502, %v503
    %v505 = vrot.slane %v504, 1
    %v506 = vadd.f32 %v504, %v505
    %s507 = vtos %v506
    %v508 = vsel %vm351, %v497, 0.0
    %509 = vadd.xlane.f32.xlu0 %v508
    %v510 = vpop.xlane.xlu0 %509
    %v511 = vrot.slane %v510, 4
    %v512 = vadd.f32 %v510, %v511
    %v513 = vrot.slane %v512, 2
    %v514 = vadd.f32 %v512, %v513
    %v515 = vrot.slane %v514, 1
    %v516 = vadd.f32 %v514, %v515
    %s517 = vtos %v516
    %v518 = vsel %vm336, 0.0, %v292
    %v519 = vsel %vm295, %v518, 0.0
    %v520 = vrot.slane %v519, 4
    %v521 = vadd.f32 %v519, %v520
    %v522 = vrot.slane %v521, 2
    %v523 = vadd.f32 %v521, %v522
    %v524 = vrot.slane %v523, 1
    %v525 = vadd.f32 %v523, %v524
    %v526 = vsub.f32 %v331, %v525
    %v527 = vmin.f32 %v526, 0.0
    %v528 = vsel %vm295, %v527, 0.0
    %529 = vadd.xlane.f32.xlu0 %v528
    %v530 = vpop.xlane.xlu0 %529
    %v531 = vrot.slane %v530, 4
    %v532 = vadd.f32 %v530, %v531
    %v533 = vrot.slane %v532, 2
    %v534 = vadd.f32 %v532, %v533
    %v535 = vrot.slane %v534, 1
    %v536 = vadd.f32 %v534, %v535
    %s537 = vtos %v536
    %vm538 = vcmp.gt.f32.partialorder %v526, -0.4
    %v539 = vsel %vm538, 1.0, 0.0
    %v540 = vsel %vm295, %v539, 0.0
    %541 = vadd.xlane.f32.xlu0 %v540
    %v542 = vpop.xlane.xlu0 %541
    %v543 = vrot.slane %v542, 4
    %v544 = vadd.f32 %v542, %v543
    %v545 = vrot.slane %v544, 2
    %v546 = vadd.f32 %v544, %v545
    %v547 = vrot.slane %v546, 1
    %v548 = vadd.f32 %v546, %v547
    %s549 = vtos %v548
    %s550 = ssub.f32 %s507, %s537
    %s551 = ssub.f32 %s517, %s549
    %s552 = ssub.f32 0.0, %s550
    %v553 = vrcp.pop 448.0
    %s554 = vtos %v553
    %s555 = smul.f32 %s552, %s554
    %s556 = scalar_lea.smem [#allocation3], 0
    %557 = sst [smem:[%s556]] %s555
    %s558 = smul.f32 %s551, 100.0
    %v559 = vrcp.pop 448.0
    %s560 = vtos %v559
    %s561 = smul.f32 %s558, %s560
    %s562 = scalar_lea.smem [#allocation3], 1
    %563 = sst [smem:[%s562]] %s561
    %s564 = smul.f32 %s361, 100.0
    %v565 = vrcp.pop 8.0
    %s566 = vtos %v565
    %s567 = smul.f32 %s564, %s566
    %s568 = scalar_lea.smem [#allocation3], 2
    %569 = sst [smem:[%s568]] %s567
    // Predicated region
    $region6: #{tpu_custom_call.1} parent=1 // pred_check
      _
    $region7: #{tpu_custom_call.1} parent=1 // pred_check_branch
      %571 = sbr.rel (0) target = $region9
    $region8: #{tpu_custom_call.1} parent=1 // pred_region
      %s573 = ssub.s32 16, 16
      %574 = vsyncadd [#allocation4], %s573
      %577 = dma.smem_to_hbm [#allocation3], 16, %s1, [#allocation4]
    $region9: #{tpu_custom_call.1} parent=1 // pred_fallthru
      _
    // Predicated region
    $region10: #{tpu_custom_call.1} parent=1 // pred_check
      _
    $region11: #{tpu_custom_call.1} parent=1 // pred_check_branch
      %579 = sbr.rel (0) target = $region13
    $region12: #{tpu_custom_call.1} parent=1 // pred_region
      %580 = dma.done [#allocation4], 16
    $region13: #{tpu_custom_call.1} parent=1 // pred_fallthru
      _
    %581 = sfence
    %582 = vsyncpa [#allocation4], 1

</llo_original>
